<compile_context>
chip_gen: v5e
topology: v5e:2x2
jax: 0.10.0
libtpu: 0.0.40
codegen_flags: <defaults>
</compile_context>

<pallas_src>
import math
import functools

import jax
import jax.numpy as jnp
from jax import lax
from jax.experimental import pallas as pl
from jax.experimental.pallas import tpu as pltpu


def _sigmoid_in_kernel(x):
    # exp -> EUP; approx reciprocal -> EUP (its own VLIW slot) instead of a VPU divide
    return pl.reciprocal(1.0 + jnp.exp(-x), approx=True)


def _lstm_cell_math(xh_f32, c_prev_f32, w, b, hidden_size):
    """One LSTMCell step given the fused [x | h_prev] operand and fused weight.

    xh_f32:     (B, D_pad+H) f32
    c_prev_f32: (B, H)       f32
    w:          (D_pad+H, 4H) param dtype (single MXU dot, f32 accumulation)
    b:          (1, 4H)      f32  (= b_ih + b_hh)
    gate layout matches torch.nn.LSTMCell: [i | f | g | o] along 4H (lane axis)
    """
    H = hidden_size
    gates = jnp.dot(xh_f32.astype(w.dtype), w,
                    preferred_element_type=jnp.float32) + b            # (B, 4H)
    i_g = _sigmoid_in_kernel(gates[:, 0:H])
    f_g = _sigmoid_in_kernel(gates[:, H:2 * H])
    g_g = jnp.tanh(gates[:, 2 * H:3 * H])
    o_g = _sigmoid_in_kernel(gates[:, 3 * H:4 * H])
    c_new = f_g * c_prev_f32 + i_g * g_g
    h_new = o_g * jnp.tanh(c_new)
    return h_new, c_new


def _stacked_lstm_resident_kernel(x_ref, h0_ref, c0_ref, w_ref, b_ref,
                                  h1_ref, c1_ref, xh_scratch,
                                  *, hidden_size, num_layers, d_pad):
    """grid = (num_batch_tiles,): all fused weights resident, layer loop in-kernel.

    x_ref:   (Bt, D_pad)          layer-0 input (zero-padded to D_pad)
    h0/c0:   (L, Bt, H)
    w_ref:   (L, D_pad+H, 4H)     fused [W_ih^T ; W_hh^T] per layer
    b_ref:   (L, 1, 4H)           pre-summed biases (f32)
    h1/c1:   (L, Bt, H)
    xh_scratch: (Bt, D_pad+H)     f32 fused [layer input | h_prev] operand
    """
    H = hidden_size
    xh_scratch[:, 0:d_pad] = x_ref[...].astype(jnp.float32)

    def layer_body(l, carry):
        xh_scratch[:, d_pad:d_pad + H] = h0_ref[l].astype(jnp.float32)
        h_new, c_new = _lstm_cell_math(xh_scratch[...],
                                       c0_ref[l].astype(jnp.float32),
                                       w_ref[l], b_ref[l], H)
        h1_ref[l] = h_new.astype(h1_ref.dtype)
        c1_ref[l] = c_new.astype(c1_ref.dtype)
        # next layer's input = h_new (inter-layer dropout is identity in eval/p=0)
        # Columns [H:d_pad] (if input_size > H) hold stale x but hit zero-padded
        # weight rows for layers > 0, so the result is exact.
        # TODO(synk): when input_size >> hidden_size, skip the zero tail for
        #             layers > 0 instead of multiplying it.
        xh_scratch[:, 0:H] = h_new
        return carry

    lax.fori_loop(0, num_layers, layer_body, 0, unroll=True)


def _stacked_lstm_streamed_kernel(x_ref, h0_ref, c0_ref, w_ref, b_ref,
                                  h1_ref, c1_ref, xh_scratch,
                                  *, hidden_size, d_pad):
    """grid = (num_batch_tiles, L): one layer's fused weight streamed per step."""
    H = hidden_size
    layer = pl.program_id(1)

    @pl.when(layer == 0)
    def _():
        xh_scratch[:, 0:d_pad] = x_ref[...].astype(jnp.float32)

    xh_scratch[:, d_pad:d_pad + H] = h0_ref[...].astype(jnp.float32)
    h_new, c_new = _lstm_cell_math(xh_scratch[...],
                                   c0_ref[...].astype(jnp.float32),
                                   w_ref[...], b_ref[...], H)
    h1_ref[...] = h_new.astype(h1_ref.dtype)
    c1_ref[...] = c_new.astype(c1_ref.dtype)
    xh_scratch[:, 0:H] = h_new


def pack_params(params, input_size, hidden_size, param_dtype=jnp.bfloat16):
    """params: list of (W_ih (4H,Din), W_hh (4H,H), b_ih (4H,), b_hh (4H,)) in
    torch.nn.LSTMCell layout.  Returns:
      w: (L, D_pad+H, 4H)  fused [W_ih^T ; W_hh^T], zero-padded, param_dtype
      b: (L, 1, 4H)        b_ih + b_hh, f32
    """
    d_pad = max(input_size, hidden_size)
    w_list, b_list = [], []
    for layer, (w_ih, w_hh, b_ih, b_hh) in enumerate(params):
        d_in = input_size if layer == 0 else hidden_size
        w_ih_t = w_ih.T                                        # (d_in, 4H)
        if d_in < d_pad:
            w_ih_t = jnp.pad(w_ih_t, ((0, d_pad - d_in), (0, 0)))
        w_fused = jnp.concatenate([w_ih_t, w_hh.T], axis=0)    # (d_pad + H, 4H)
        w_list.append(w_fused.astype(param_dtype))
        b_list.append((b_ih + b_hh)[None, :].astype(jnp.float32))
    return jnp.stack(w_list), jnp.stack(b_list)


def _pick_batch_tile(batch):
    # v7x has 2 TensorCores: split the batch across them when it is large enough
    # (sublane dim of a proper tile must stay a multiple of 8). Harmless elsewhere.
    if batch >= 16 and batch % 2 == 0 and (batch // 2) % 8 == 0:
        return batch // 2
    return batch


def stacked_lstm_forward(x, h0, c0, packed, *, hidden_size, dropout_p=0.0,
                         force_path=None):
    """x: (B, input_size); h0/c0: (num_layers, B, H); packed from pack_params.

    Returns (out, (h1, c1)) with the same semantics as StackedLSTM.forward
    (eval-mode / p=0 dropout).
    """
    del dropout_p  # nn.Dropout is identity in eval / p=0 (see TODO in kernel)
    w, b = packed
    L, d_tot, four_h = w.shape
    H = hidden_size
    assert four_h == 4 * H
    d_pad = d_tot - H
    B, d_in = x.shape
    assert h0.shape == (L, B, H) and c0.shape == (L, B, H)
    if d_in < d_pad:
        x = jnp.pad(x, ((0, 0), (0, d_pad - d_in)))

    bt = _pick_batch_tile(B)
    nb = B // bt
    io_isz = jnp.dtype(x.dtype).itemsize
    w_isz = jnp.dtype(w.dtype).itemsize

    # --- VMEM budgeting (double-buffered blocks, conservative) ---------------
    w_bytes = w.size * w_isz + b.size * 4
    io_block_bytes = bt * d_pad * io_isz + 4 * L * bt * H * io_isz
    scratch_bytes = bt * d_tot * 4
    resident_bytes = 2 * (w_bytes + io_block_bytes) + scratch_bytes
    streamed_bytes = 2 * (w_bytes // L + 4 * H * 4
                          + bt * d_pad * io_isz + 4 * bt * H * io_isz) + scratch_bytes

    path = force_path
    if path is None:
        path = "resident" if resident_bytes <= (40 << 20) else "streamed"

    flops = int(L * (2 * B * d_tot * 4 * H + 12 * B * H))
    transc = int(L * B * 8 * H)        # 3 exp + 3 approx-recip + 2 tanh widths / layer
    bytes_accessed = int(x.size * io_isz + (h0.size + c0.size) * io_isz
                         + w.size * w_isz + b.size * 4 + 2 * L * B * H * io_isz)
    cost = pl.CostEstimate(flops=flops, transcendentals=transc,
                           bytes_accessed=bytes_accessed)

    out_shapes = (jax.ShapeDtypeStruct((L, B, H), x.dtype),   # h1
                  jax.ShapeDtypeStruct((L, B, H), x.dtype))   # c1

    if path == "resident":
        vmem_limit = int(min(max(2 * resident_bytes, 32 << 20), 48 << 20))
        kernel = functools.partial(_stacked_lstm_resident_kernel,
                                   hidden_size=H, num_layers=L, d_pad=d_pad)
        h1, c1 = pl.pallas_call(
            kernel,
            out_shape=out_shapes,
            grid=(nb,),
            in_specs=[
                pl.BlockSpec((bt, d_pad), lambda bi: (bi, 0)),            # x tile
                pl.BlockSpec((L, bt, H), lambda bi: (0, bi, 0)),          # h0
                pl.BlockSpec((L, bt, H), lambda bi: (0, bi, 0)),          # c0
                pl.BlockSpec((L, d_tot, 4 * H), lambda bi: (0, 0, 0)),    # fused W (resident)
                pl.BlockSpec((L, 1, 4 * H), lambda bi: (0, 0, 0)),        # fused bias
            ],
            out_specs=(
                pl.BlockSpec((L, bt, H), lambda bi: (0, bi, 0)),          # h1
                pl.BlockSpec((L, bt, H), lambda bi: (0, bi, 0)),          # c1
            ),
            scratch_shapes=[pltpu.VMEM((bt, d_tot), jnp.float32)],
            compiler_params=pltpu.CompilerParams(
                dimension_semantics=("parallel",),
                vmem_limit_bytes=vmem_limit),
            cost_estimate=cost,
        )(x, h0, c0, w, b)
    else:
        vmem_limit = int(min(max(2 * streamed_bytes, 32 << 20), 48 << 20))
        kernel = functools.partial(_stacked_lstm_streamed_kernel,
                                   hidden_size=H, d_pad=d_pad)
        h1, c1 = pl.pallas_call(
            kernel,
            out_shape=out_shapes,
            grid=(nb, L),                                                  # layer axis last
            in_specs=[
                pl.BlockSpec((bt, d_pad), lambda bi, l: (bi, 0)),
                pl.BlockSpec((None, bt, H), lambda bi, l: (l, bi, 0)),
                pl.BlockSpec((None, bt, H), lambda bi, l: (l, bi, 0)),
                pl.BlockSpec((None, d_tot, 4 * H), lambda bi, l: (l, 0, 0)),
                pl.BlockSpec((None, 1, 4 * H), lambda bi, l: (l, 0, 0)),
            ],
            out_specs=(
                pl.BlockSpec((None, bt, H), lambda bi, l: (l, bi, 0)),
                pl.BlockSpec((None, bt, H), lambda bi, l: (l, bi, 0)),
            ),
            scratch_shapes=[pltpu.VMEM((bt, d_tot), jnp.float32)],
            compiler_params=pltpu.CompilerParams(
                dimension_semantics=("parallel", "arbitrary"),
                vmem_limit_bytes=vmem_limit),
            cost_estimate=cost,
        )(x, h0, c0, w, b)

    out = h1[L - 1]   # module's returned `input` == last layer's h (no dropout after last)
    return out, (h1, c1)


# ----------------------- pure-JAX reference (for the check) -----------------------

def _lstm_cell_ref(x, h, c, w_ih, w_hh, b_ih, b_hh):
    gates = x @ w_ih.T + b_ih + h @ w_hh.T + b_hh
    i, f, g, o = jnp.split(gates, 4, axis=-1)
    i, f, o = jax.nn.sigmoid(i), jax.nn.sigmoid(f), jax.nn.sigmoid(o)
    g = jnp.tanh(g)
    c_new = f * c + i * g
    h_new = o * jnp.tanh(c_new)
    return h_new, c_new


def stacked_lstm_ref(x, h0, c0, params):
    h_list, c_list = [], []
    inp = x
    for layer, (w_ih, w_hh, b_ih, b_hh) in enumerate(params):
        h_new, c_new = _lstm_cell_ref(inp, h0[layer], c0[layer], w_ih, w_hh, b_ih, b_hh)
        inp = h_new                        # dropout identity (eval / p=0)
        h_list.append(h_new)
        c_list.append(c_new)
    return inp, (jnp.stack(h_list), jnp.stack(c_list))


if __name__ == "__main__":
    NUM_LAYERS, BATCH, INPUT_SIZE, HIDDEN_SIZE = 2, 2, 32, 32
    DROPOUT = 0.0  # eval-mode / p=0 semantics

    key = jax.random.PRNGKey(0)
    keys = jax.random.split(key, 3 + 4 * NUM_LAYERS)
    x = jax.random.normal(keys[0], (BATCH, INPUT_SIZE), dtype=jnp.float32)
    h0 = jax.random.normal(keys[1], (NUM_LAYERS, BATCH, HIDDEN_SIZE), dtype=jnp.float32)
    c0 = jax.random.normal(keys[2], (NUM_LAYERS, BATCH, HIDDEN_SIZE), dtype=jnp.float32)

    params = []
    scale = 1.0 / math.sqrt(HIDDEN_SIZE)
    for layer in range(NUM_LAYERS):
        d_in = INPUT_SIZE if layer == 0 else HIDDEN_SIZE
        k = keys[3 + 4 * layer: 3 + 4 * (layer + 1)]
        w_ih = jax.random.uniform(k[0], (4 * HIDDEN_SIZE, d_in),
                                  minval=-scale, maxval=scale, dtype=jnp.float32)
        w_hh = jax.random.uniform(k[1], (4 * HIDDEN_SIZE, HIDDEN_SIZE),
                                  minval=-scale, maxval=scale, dtype=jnp.float32)
        b_ih = jax.random.uniform(k[2], (4 * HIDDEN_SIZE,),
                                  minval=-scale, maxval=scale, dtype=jnp.float32)
        b_hh = jax.random.uniform(k[3], (4 * HIDDEN_SIZE,),
                                  minval=-scale, maxval=scale, dtype=jnp.float32)
        params.append((w_ih, w_hh, b_ih, b_hh))

    packed = pack_params(params, INPUT_SIZE, HIDDEN_SIZE)   # bf16 fused weights

    # default path (resident weights, layer loop in-kernel)
    out, (h1, c1) = stacked_lstm_forward(x, h0, c0, packed,
                                         hidden_size=HIDDEN_SIZE, dropout_p=DROPOUT)
    out = jax.block_until_ready(out)

    # layer-streamed fallback path (used when the weight stack exceeds the VMEM budget)
    out_s, (h1_s, c1_s) = stacked_lstm_forward(x, h0, c0, packed,
                                               hidden_size=HIDDEN_SIZE,
                                               dropout_p=DROPOUT,
                                               force_path="streamed")
    out_s = jax.block_until_ready(out_s)

    ref_out, (ref_h1, ref_c1) = stacked_lstm_ref(x, h0, c0, params)

    assert out.shape == (BATCH, HIDDEN_SIZE)
    assert h1.shape == (NUM_LAYERS, BATCH, HIDDEN_SIZE)
    assert c1.shape == (NUM_LAYERS, BATCH, HIDDEN_SIZE)
    # bf16 weight streaming + default-precision MXU accumulation -> modest tolerance
    tol = dict(atol=2e-2, rtol=2e-2)
    assert jnp.allclose(out, ref_out, **tol)
    assert jnp.allclose(h1, ref_h1, **tol)
    assert jnp.allclose(c1, ref_c1, **tol)
    assert jnp.allclose(out_s, ref_out, **tol)
    assert jnp.allclose(h1_s, ref_h1, **tol)
    assert jnp.allclose(c1_s, ref_c1, **tol)

    print("KERNEL_OK")
</pallas_src>

<mosaic_0001>
module attributes {stable_mosaic.version = 11 : i64} {
  func.func @_stacked_lstm_resident_kernel(%arg0: i32, %arg1: memref<2x32xf32, #tpu.memory_space<vmem>>, %arg2: memref<2x2x32xf32, #tpu.memory_space<vmem>>, %arg3: memref<2x2x32xf32, #tpu.memory_space<vmem>>, %arg4: memref<2x64x128xbf16, #tpu.memory_space<vmem>>, %arg5: memref<2x1x128xf32, #tpu.memory_space<vmem>>, %arg6: memref<2x2x32xf32, #tpu.memory_space<vmem>>, %arg7: memref<2x2x32xf32, #tpu.memory_space<vmem>>, %arg8: memref<2x64xf32, #tpu.memory_space<vmem>>) attributes {dimension_semantics = [#tpu.dimension_semantics<parallel>], iteration_bounds = array<i64: 1>, scalar_prefetch = 0 : i64, scratch_operands = 1 : i64, tpu.core_type = #tpu.core_type<tc>, window_params = [{transform_indices = @transform_0, window_bounds = array<i64: 2, 32>}, {transform_indices = @transform_1, window_bounds = array<i64: 2, 2, 32>}, {transform_indices = @transform_2, window_bounds = array<i64: 2, 2, 32>}, {pipeline_mode = #tpu.pipeline_mode<synchronous>, transform_indices = @transform_3, window_bounds = array<i64: 2, 64, 128>}, {pipeline_mode = #tpu.pipeline_mode<synchronous>, transform_indices = @transform_4, window_bounds = array<i64: 2, 1, 128>}, {transform_indices = @transform_5, window_bounds = array<i64: 2, 2, 32>}, {transform_indices = @transform_6, window_bounds = array<i64: 2, 2, 32>}]} {
    %c0 = arith.constant 0 : index
    %c0_0 = arith.constant 0 : index
    %0 = vector.load %arg1[%c0, %c0_0] : memref<2x32xf32, #tpu.memory_space<vmem>>, vector<2x32xf32>
    %c0_1 = arith.constant 0 : index
    %c0_2 = arith.constant 0 : index
    %1 = vector.load %arg8[%c0_1, %c0_2] : memref<2x64xf32, #tpu.memory_space<vmem>>, vector<2x32xf32>
    tpu.vector_store %arg8[%c0_1, %c0_2], %0 {strides = array<i32>} : memref<2x64xf32, #tpu.memory_space<vmem>>, vector<2x32xf32>,
    %c0_i32 = arith.constant 0 : i32
    %2 = arith.index_cast %c0_i32 : i32 to index
    %c0_3 = arith.constant 0 : index
    %c0_4 = arith.constant 0 : index
    %3 = vector.load %arg2[%2, %c0_3, %c0_4] : memref<2x2x32xf32, #tpu.memory_space<vmem>>, vector<1x2x32xf32>
    %4 = vector.shape_cast %3 : vector<1x2x32xf32> to vector<2x32xf32>
    %c0_5 = arith.constant 0 : index
    %c32 = arith.constant 32 : index
    %5 = vector.load %arg8[%c0_5, %c32] : memref<2x64xf32, #tpu.memory_space<vmem>>, vector<2x32xf32>
    tpu.vector_store %arg8[%c0_5, %c32], %4 {strides = array<i32>} : memref<2x64xf32, #tpu.memory_space<vmem>>, vector<2x32xf32>,
    %c0_6 = arith.constant 0 : index
    %c0_7 = arith.constant 0 : index
    %6 = vector.load %arg8[%c0_6, %c0_7] : memref<2x64xf32, #tpu.memory_space<vmem>>, vector<2x64xf32>
    %7 = arith.index_cast %c0_i32 : i32 to index
    %c0_8 = arith.constant 0 : index
    %c0_9 = arith.constant 0 : index
    %8 = vector.load %arg3[%7, %c0_8, %c0_9] : memref<2x2x32xf32, #tpu.memory_space<vmem>>, vector<1x2x32xf32>
    %9 = vector.shape_cast %8 : vector<1x2x32xf32> to vector<2x32xf32>
    %10 = arith.index_cast %c0_i32 : i32 to index
    %c0_10 = arith.constant 0 : index
    %c0_11 = arith.constant 0 : index
    %11 = vector.load %arg4[%10, %c0_10, %c0_11] : memref<2x64x128xbf16, #tpu.memory_space<vmem>>, vector<1x64x128xbf16>
    %12 = vector.shape_cast %11 : vector<1x64x128xbf16> to vector<64x128xbf16>
    %13 = arith.index_cast %c0_i32 : i32 to index
    %c0_12 = arith.constant 0 : index
    %c0_13 = arith.constant 0 : index
    %14 = vector.load %arg5[%13, %c0_12, %c0_13] : memref<2x1x128xf32, #tpu.memory_space<vmem>>, vector<1x1x128xf32>
    %15 = vector.shape_cast %14 : vector<1x1x128xf32> to vector<1x128xf32>
    %16 = arith.truncf %6 : vector<2x64xf32> to vector<2x64xbf16>
    %cst = arith.constant dense<0.000000e+00> : vector<2x128xf32>
    %17 = tpu.matmul %16, %12, %cst {dimension_numbers = #tpu.dot_dimension_numbers<[1], [0], [0], [1], [0, 0, 1, 1], [], []>} : vector<2x64xbf16>, vector<64x128xbf16>, vector<2x128xf32> -> vector<2x128xf32>
    %18 = vector.broadcast %15 : vector<1x128xf32> to vector<2x128xf32>
    %19 = arith.addf %17, %18 : vector<2x128xf32>
    %20 = vector.extract_strided_slice %19 {offsets = [0, 0], sizes = [2, 32], strides = [1, 1]} : vector<2x128xf32> to vector<2x32xf32>
    %cst_14 = arith.constant 0.000000e+00 : f32
    %21 = vector.broadcast %cst_14 : f32 to vector<2x32xf32>
    %22 = arith.subf %21, %20 : vector<2x32xf32>
    %23 = math.exp %22 : vector<2x32xf32>
    %cst_15 = arith.constant 1.000000e+00 : f32
    %24 = vector.broadcast %cst_15 : f32 to vector<2x32xf32>
    %25 = arith.addf %24, %23 : vector<2x32xf32>
    %26 = tpu.reciprocal %25 {approx = true} : vector<2x32xf32> -> vector<2x32xf32>
    %27 = vector.extract_strided_slice %19 {offsets = [0, 32], sizes = [2, 32], strides = [1, 1]} : vector<2x128xf32> to vector<2x32xf32>
    %cst_16 = arith.constant 0.000000e+00 : f32
    %28 = vector.broadcast %cst_16 : f32 to vector<2x32xf32>
    %29 = arith.subf %28, %27 : vector<2x32xf32>
    %30 = math.exp %29 : vector<2x32xf32>
    %cst_17 = arith.constant 1.000000e+00 : f32
    %31 = vector.broadcast %cst_17 : f32 to vector<2x32xf32>
    %32 = arith.addf %31, %30 : vector<2x32xf32>
    %33 = tpu.reciprocal %32 {approx = true} : vector<2x32xf32> -> vector<2x32xf32>
    %34 = vector.extract_strided_slice %19 {offsets = [0, 64], sizes = [2, 32], strides = [1, 1]} : vector<2x128xf32> to vector<2x32xf32>
    %35 = math.tanh %34 : vector<2x32xf32>
    %36 = vector.extract_strided_slice %19 {offsets = [0, 96], sizes = [2, 32], strides = [1, 1]} : vector<2x128xf32> to vector<2x32xf32>
    %cst_18 = arith.constant 0.000000e+00 : f32
    %37 = vector.broadcast %cst_18 : f32 to vector<2x32xf32>
    %38 = arith.subf %37, %36 : vector<2x32xf32>
    %39 = math.exp %38 : vector<2x32xf32>
    %cst_19 = arith.constant 1.000000e+00 : f32
    %40 = vector.broadcast %cst_19 : f32 to vector<2x32xf32>
    %41 = arith.addf %40, %39 : vector<2x32xf32>
    %42 = tpu.reciprocal %41 {approx = true} : vector<2x32xf32> -> vector<2x32xf32>
    %43 = arith.mulf %33, %9 : vector<2x32xf32>
    %44 = arith.mulf %26, %35 : vector<2x32xf32>
    %45 = arith.addf %43, %44 : vector<2x32xf32>
    %46 = math.tanh %45 : vector<2x32xf32>
    %47 = arith.mulf %42, %46 : vector<2x32xf32>
    %48 = arith.index_cast %c0_i32 : i32 to index
    %c0_20 = arith.constant 0 : index
    %c0_21 = arith.constant 0 : index
    %49 = vector.load %arg6[%48, %c0_20, %c0_21] : memref<2x2x32xf32, #tpu.memory_space<vmem>>, vector<1x2x32xf32>
    %50 = vector.shape_cast %49 : vector<1x2x32xf32> to vector<2x32xf32>
    %51 = vector.shape_cast %47 : vector<2x32xf32> to vector<1x2x32xf32>
    tpu.vector_store %arg6[%48, %c0_20, %c0_21], %51 {strides = array<i32>} : memref<2x2x32xf32, #tpu.memory_space<vmem>>, vector<1x2x32xf32>,
    %52 = arith.index_cast %c0_i32 : i32 to index
    %c0_22 = arith.constant 0 : index
    %c0_23 = arith.constant 0 : index
    %53 = vector.load %arg7[%52, %c0_22, %c0_23] : memref<2x2x32xf32, #tpu.memory_space<vmem>>, vector<1x2x32xf32>
    %54 = vector.shape_cast %53 : vector<1x2x32xf32> to vector<2x32xf32>
    %55 = vector.shape_cast %45 : vector<2x32xf32> to vector<1x2x32xf32>
    tpu.vector_store %arg7[%52, %c0_22, %c0_23], %55 {strides = array<i32>} : memref<2x2x32xf32, #tpu.memory_space<vmem>>, vector<1x2x32xf32>,
    %c0_24 = arith.constant 0 : index
    %c0_25 = arith.constant 0 : index
    %56 = vector.load %arg8[%c0_24, %c0_25] : memref<2x64xf32, #tpu.memory_space<vmem>>, vector<2x32xf32>
    tpu.vector_store %arg8[%c0_24, %c0_25], %47 {strides = array<i32>} : memref<2x64xf32, #tpu.memory_space<vmem>>, vector<2x32xf32>,
    %c1_i32 = arith.constant 1 : i32
    %57 = arith.index_cast %c1_i32 : i32 to index
    %c0_26 = arith.constant 0 : index
    %c0_27 = arith.constant 0 : index
    %58 = vector.load %arg2[%57, %c0_26, %c0_27] : memref<2x2x32xf32, #tpu.memory_space<vmem>>, vector<1x2x32xf32>
    %59 = vector.shape_cast %58 : vector<1x2x32xf32> to vector<2x32xf32>
    %c0_28 = arith.constant 0 : index
    %c32_29 = arith.constant 32 : index
    %60 = vector.load %arg8[%c0_28, %c32_29] : memref<2x64xf32, #tpu.memory_space<vmem>>, vector<2x32xf32>
    tpu.vector_store %arg8[%c0_28, %c32_29], %59 {strides = array<i32>} : memref<2x64xf32, #tpu.memory_space<vmem>>, vector<2x32xf32>,
    %c0_30 = arith.constant 0 : index
    %c0_31 = arith.constant 0 : index
    %61 = vector.load %arg8[%c0_30, %c0_31] : memref<2x64xf32, #tpu.memory_space<vmem>>, vector<2x64xf32>
    %62 = arith.index_cast %c1_i32 : i32 to index
    %c0_32 = arith.constant 0 : index
    %c0_33 = arith.constant 0 : index
    %63 = vector.load %arg3[%62, %c0_32, %c0_33] : memref<2x2x32xf32, #tpu.memory_space<vmem>>, vector<1x2x32xf32>
    %64 = vector.shape_cast %63 : vector<1x2x32xf32> to vector<2x32xf32>
    %65 = arith.index_cast %c1_i32 : i32 to index
    %c0_34 = arith.constant 0 : index
    %c0_35 = arith.constant 0 : index
    %66 = vector.load %arg4[%65, %c0_34, %c0_35] : memref<2x64x128xbf16, #tpu.memory_space<vmem>>, vector<1x64x128xbf16>
    %67 = vector.shape_cast %66 : vector<1x64x128xbf16> to vector<64x128xbf16>
    %68 = arith.index_cast %c1_i32 : i32 to index
    %c0_36 = arith.constant 0 : index
    %c0_37 = arith.constant 0 : index
    %69 = vector.load %arg5[%68, %c0_36, %c0_37] : memref<2x1x128xf32, #tpu.memory_space<vmem>>, vector<1x1x128xf32>
    %70 = vector.shape_cast %69 : vector<1x1x128xf32> to vector<1x128xf32>
    %71 = arith.truncf %61 : vector<2x64xf32> to vector<2x64xbf16>
    %cst_38 = arith.constant dense<0.000000e+00> : vector<2x128xf32>
    %72 = tpu.matmul %71, %67, %cst_38 {dimension_numbers = #tpu.dot_dimension_numbers<[1], [0], [0], [1], [0, 0, 1, 1], [], []>} : vector<2x64xbf16>, vector<64x128xbf16>, vector<2x128xf32> -> vector<2x128xf32>
    %73 = vector.broadcast %70 : vector<1x128xf32> to vector<2x128xf32>
    %74 = arith.addf %72, %73 : vector<2x128xf32>
    %75 = vector.extract_strided_slice %74 {offsets = [0, 0], sizes = [2, 32], strides = [1, 1]} : vector<2x128xf32> to vector<2x32xf32>
    %cst_39 = arith.constant 0.000000e+00 : f32
    %76 = vector.broadcast %cst_39 : f32 to vector<2x32xf32>
    %77 = arith.subf %76, %75 : vector<2x32xf32>
    %78 = math.exp %77 : vector<2x32xf32>
    %cst_40 = arith.constant 1.000000e+00 : f32
    %79 = vector.broadcast %cst_40 : f32 to vector<2x32xf32>
    %80 = arith.addf %79, %78 : vector<2x32xf32>
    %81 = tpu.reciprocal %80 {approx = true} : vector<2x32xf32> -> vector<2x32xf32>
    %82 = vector.extract_strided_slice %74 {offsets = [0, 32], sizes = [2, 32], strides = [1, 1]} : vector<2x128xf32> to vector<2x32xf32>
    %cst_41 = arith.constant 0.000000e+00 : f32
    %83 = vector.broadcast %cst_41 : f32 to vector<2x32xf32>
    %84 = arith.subf %83, %82 : vector<2x32xf32>
    %85 = math.exp %84 : vector<2x32xf32>
    %cst_42 = arith.constant 1.000000e+00 : f32
    %86 = vector.broadcast %cst_42 : f32 to vector<2x32xf32>
    %87 = arith.addf %86, %85 : vector<2x32xf32>
    %88 = tpu.reciprocal %87 {approx = true} : vector<2x32xf32> -> vector<2x32xf32>
    %89 = vector.extract_strided_slice %74 {offsets = [0, 64], sizes = [2, 32], strides = [1, 1]} : vector<2x128xf32> to vector<2x32xf32>
    %90 = math.tanh %89 : vector<2x32xf32>
    %91 = vector.extract_strided_slice %74 {offsets = [0, 96], sizes = [2, 32], strides = [1, 1]} : vector<2x128xf32> to vector<2x32xf32>
    %cst_43 = arith.constant 0.000000e+00 : f32
    %92 = vector.broadcast %cst_43 : f32 to vector<2x32xf32>
    %93 = arith.subf %92, %91 : vector<2x32xf32>
    %94 = math.exp %93 : vector<2x32xf32>
    %cst_44 = arith.constant 1.000000e+00 : f32
    %95 = vector.broadcast %cst_44 : f32 to vector<2x32xf32>
    %96 = arith.addf %95, %94 : vector<2x32xf32>
    %97 = tpu.reciprocal %96 {approx = true} : vector<2x32xf32> -> vector<2x32xf32>
    %98 = arith.mulf %88, %64 : vector<2x32xf32>
    %99 = arith.mulf %81, %90 : vector<2x32xf32>
    %100 = arith.addf %98, %99 : vector<2x32xf32>
    %101 = math.tanh %100 : vector<2x32xf32>
    %102 = arith.mulf %97, %101 : vector<2x32xf32>
    %103 = arith.index_cast %c1_i32 : i32 to index
    %c0_45 = arith.constant 0 : index
    %c0_46 = arith.constant 0 : index
    %104 = vector.load %arg6[%103, %c0_45, %c0_46] : memref<2x2x32xf32, #tpu.memory_space<vmem>>, vector<1x2x32xf32>
    %105 = vector.shape_cast %104 : vector<1x2x32xf32> to vector<2x32xf32>
    %106 = vector.shape_cast %102 : vector<2x32xf32> to vector<1x2x32xf32>
    tpu.vector_store %arg6[%103, %c0_45, %c0_46], %106 {strides = array<i32>} : memref<2x2x32xf32, #tpu.memory_space<vmem>>, vector<1x2x32xf32>,
    %107 = arith.index_cast %c1_i32 : i32 to index
    %c0_47 = arith.constant 0 : index
    %c0_48 = arith.constant 0 : index
    %108 = vector.load %arg7[%107, %c0_47, %c0_48] : memref<2x2x32xf32, #tpu.memory_space<vmem>>, vector<1x2x32xf32>
    %109 = vector.shape_cast %108 : vector<1x2x32xf32> to vector<2x32xf32>
    %110 = vector.shape_cast %100 : vector<2x32xf32> to vector<1x2x32xf32>
    tpu.vector_store %arg7[%107, %c0_47, %c0_48], %110 {strides = array<i32>} : memref<2x2x32xf32, #tpu.memory_space<vmem>>, vector<1x2x32xf32>,
    %c0_49 = arith.constant 0 : index
    %c0_50 = arith.constant 0 : index
    %111 = vector.load %arg8[%c0_49, %c0_50] : memref<2x64xf32, #tpu.memory_space<vmem>>, vector<2x32xf32>
    tpu.vector_store %arg8[%c0_49, %c0_50], %102 {strides = array<i32>} : memref<2x64xf32, #tpu.memory_space<vmem>>, vector<2x32xf32>,
    %c2_i32 = arith.constant 2 : i32
    return
  }
  func.func @transform_0(%arg0: i32) -> (i32, i32) {
    %c0_i32 = arith.constant 0 : i32
    %c0_i32_0 = arith.constant 0 : i32
    return %arg0, %c0_i32 : i32, i32
  }
  func.func @transform_1(%arg0: i32) -> (i32, i32, i32) {
    %c0_i32 = arith.constant 0 : i32
    %c0_i32_0 = arith.constant 0 : i32
    %c0_i32_1 = arith.constant 0 : i32
    return %c0_i32, %arg0, %c0_i32_0 : i32, i32, i32
  }
  func.func @transform_2(%arg0: i32) -> (i32, i32, i32) {
    %c0_i32 = arith.constant 0 : i32
    %c0_i32_0 = arith.constant 0 : i32
    %c0_i32_1 = arith.constant 0 : i32
    return %c0_i32, %arg0, %c0_i32_0 : i32, i32, i32
  }
  func.func @transform_3(%arg0: i32) -> (i32, i32, i32) {
    %c0_i32 = arith.constant 0 : i32
    %c0_i32_0 = arith.constant 0 : i32
    %c0_i32_1 = arith.constant 0 : i32
    %c0_i32_2 = arith.constant 0 : i32
    return %c0_i32, %c0_i32_0, %c0_i32_1 : i32, i32, i32
  }
  func.func @transform_4(%arg0: i32) -> (i32, i32, i32) {
    %c0_i32 = arith.constant 0 : i32
    %c0_i32_0 = arith.constant 0 : i32
    %c0_i32_1 = arith.constant 0 : i32
    %c0_i32_2 = arith.constant 0 : i32
    return %c0_i32, %c0_i32_0, %c0_i32_1 : i32, i32, i32
  }
  func.func @transform_5(%arg0: i32) -> (i32, i32, i32) {
    %c0_i32 = arith.constant 0 : i32
    %c0_i32_0 = arith.constant 0 : i32
    %c0_i32_1 = arith.constant 0 : i32
    return %c0_i32, %arg0, %c0_i32_0 : i32, i32, i32
  }
  func.func @transform_6(%arg0: i32) -> (i32, i32, i32) {
    %c0_i32 = arith.constant 0 : i32
    %c0_i32_0 = arith.constant 0 : i32
    %c0_i32_1 = arith.constant 0 : i32
    return %c0_i32, %arg0, %c0_i32_0 : i32, i32, i32
  }
}

</mosaic_0001>

<llo_original>
// kernel: tpu_custom_call.1
$region0: #{tpu_custom_call.1}
  #allocation0 [shape = 'u32[]', space=smem, size = 0x4, offset = 0x4, fixed_abs, tag = 'smem constant byte address 0x4 - core index']
  #allocation1 [shape = 'u32[72,128]{1,0:T(1,128)}', space=vmem, size = 0x9000, scoped, tag = 'internal scratch']
  #allocation2 [shape = 'f32[2,64]{1,0:T(2,128)}', space=vmem, size = 0x400, scoped, tag = 'scratch operand']
  %s0 = inlined_call_operand.hbm [shape: f32[2,32], index: 0, kind: input, shape index: {}]
  %s1 = inlined_call_operand.hbm [shape: f32[2,2,32], index: 1, kind: input, shape index: {}]
  %s2 = inlined_call_operand.hbm [shape: f32[2,2,32], index: 2, kind: input, shape index: {}]
  %s3 = inlined_call_operand.hbm [shape: bf16[2,64,128], index: 3, kind: input, shape index: {}]
  %s4 = inlined_call_operand.vmem [shape: f32[2,1,128], index: 4, kind: input, shape index: {}]
  %s5 = inlined_call_operand.hbm [shape: f32[2,2,32], index: 5, kind: output, shape index: {0}]
  %s6 = inlined_call_operand.hbm [shape: f32[2,2,32], index: 6, kind: output, shape index: {1}]
  %7 = xla_tuple %s5, %s6
  %s8 = sld [smem:[#allocation0]]
  $region54: #{tpu_custom_call.1} parent=0
    _
  %s10 = ssub.s32 1, %s8
  %s11 = scalar_select 0, %s10, %s8
  $region1: #{tpu_custom_call.1} parent=0
    #allocation3 [shape = 'u8[1024]{0}', space=vmem, size = 0x400, scoped, tag = 'input window, operand 0, single buffered']
    #allocation4 [shape = 's32[1]{0}', space=sflag, size = 0x4, scoped, tag = 'scoped memory for tpu_custom_call.1']
    #allocation5 [shape = 's32[1]{0}', space=sflag, size = 0x4, scoped, tag = 'scoped memory for tpu_custom_call.1']
    #allocation6 [shape = 'u8[2048]{0}', space=vmem, size = 0x800, scoped, tag = 'input window, operand 1, single buffered']
    #allocation7 [shape = 's32[1]{0}', space=sflag, size = 0x4, scoped, tag = 'scoped memory for tpu_custom_call.1']
    #allocation8 [shape = 'u8[2048]{0}', space=vmem, size = 0x800, scoped, tag = 'input window, operand 2, single buffered']
    #allocation9 [shape = 'u8[32768]{0}', space=vmem, size = 0x8000, scoped, tag = 'input window, operand 3, single buffered']
    #allocation10 [shape = 's32[1]{0}', space=sflag, size = 0x4, scoped, tag = 'scoped memory for tpu_custom_call.1']
    #allocation11 [shape = 'u8[2048]{0}', space=vmem, size = 0x800, scoped, tag = 'output window, operand 0, single buffered']
    #allocation12 [shape = 'u8[2048]{0}', space=vmem, size = 0x800, scoped, tag = 'output window, operand 1, single buffered']
    #allocation13 [shape = 's32[1]{0}', space=sflag, size = 0x4, scoped, tag = 'scoped memory for tpu_custom_call.1']
    %12 = vsyncpa [#allocation4], 0
    %13 = vsyncpa [#allocation7], 0
    %14 = vsyncpa [#allocation10], 0
    %15 = vsyncpa [#allocation5], 0
    %16 = vsyncpa [#allocation13], 0
    // Predicated region
    $region2: #{tpu_custom_call.1} parent=1 // pred_check
      _
    $region3: #{tpu_custom_call.1} parent=1 // pred_check_branch
      %18 = sbr.rel (0) target = $region5
    $region4: #{tpu_custom_call.1} parent=1 // pred_region
      %20 = vsyncadd [#allocation4], 0
      %s22 = sshll.u32 %s0, 4
      %s23 = int_to_ptr.hbm [resolvable:$true] %s22
      %s24 = sshll.u32 [#allocation3], 4
      %s25 = int_to_ptr.vmem [resolvable:$true] %s24
      %27 = dma.hbm_to_vmem [thread:$0]  %s23, 32, %s25, [#allocation4]
    $region5: #{tpu_custom_call.1} parent=1 // pred_fallthru
      _
    // Predicated region
    $region6: #{tpu_custom_call.1} parent=1 // pred_check
      _
    $region7: #{tpu_custom_call.1} parent=1 // pred_check_branch
      %29 = sbr.rel (0) target = $region9
    $region8: #{tpu_custom_call.1} parent=1 // pred_region
      %31 = vsyncadd [#allocation7], 0
      %s32 = sshll.u32 %s1, 4
      %s33 = int_to_ptr.hbm [resolvable:$true] %s32
      %s34 = sshll.u32 [#allocation6], 4
      %s35 = int_to_ptr.vmem [resolvable:$true] %s34
      %40 = dma.hbm_to_vmem [thread:$0]  %s33, 64, %s35, [#allocation7], 32, 32, 2
    $region9: #{tpu_custom_call.1} parent=1 // pred_fallthru
      _
    // Predicated region
    $region10: #{tpu_custom_call.1} parent=1 // pred_check
      _
    $region11: #{tpu_custom_call.1} parent=1 // pred_check_branch
      %42 = sbr.rel (0) target = $region13
    $region12: #{tpu_custom_call.1} parent=1 // pred_region
      %44 = vsyncadd [#allocation7], 0
      %s45 = sshll.u32 %s2, 4
      %s46 = int_to_ptr.hbm [resolvable:$true] %s45
      %s47 = sshll.u32 [#allocation8], 4
      %s48 = int_to_ptr.vmem [resolvable:$true] %s47
      %53 = dma.hbm_to_vmem [thread:$0]  %s46, 64, %s48, [#allocation7], 32, 32, 2
    $region13: #{tpu_custom_call.1} parent=1 // pred_fallthru
      _
    // Predicated region
    $region14: #{tpu_custom_call.1} parent=1 // pred_check
      _
    $region15: #{tpu_custom_call.1} parent=1 // pred_check_branch
      %55 = sbr.rel (0) target = $region17
    $region16: #{tpu_custom_call.1} parent=1 // pred_region
      %57 = vsyncadd [#allocation10], 0
      %s58 = sshll.u32 %s3, 4
      %s59 = int_to_ptr.hbm [resolvable:$true] %s58
      %s60 = sshll.u32 [#allocation9], 4
      %s61 = int_to_ptr.vmem [resolvable:$true] %s60
      %66 = dma.hbm_to_vmem [thread:$0]  %s59, 1024, %s61, [#allocation10], 64, 64, 4
    $region17: #{tpu_custom_call.1} parent=1 // pred_fallthru
      _
    // Predicated region
    $region18: #{tpu_custom_call.1} parent=1 // pred_check
      _
    $region19: #{tpu_custom_call.1} parent=1 // pred_check_branch
      %68 = sbr.rel (0) target = $region21
    $region20: #{tpu_custom_call.1} parent=1 // pred_region
      _
    $region21: #{tpu_custom_call.1} parent=1 // pred_fallthru
      _
    // Predicated region
    $region22: #{tpu_custom_call.1} parent=1 // pred_check
      _
    $region23: #{tpu_custom_call.1} parent=1 // pred_check_branch
      %70 = sbr.rel (0) target = $region25
    $region24: #{tpu_custom_call.1} parent=1 // pred_region
      %72 = dma.done [#allocation4], 32
    $region25: #{tpu_custom_call.1} parent=1 // pred_fallthru
      _
    // Predicated region
    $region26: #{tpu_custom_call.1} parent=1 // pred_check
      _
    $region27: #{tpu_custom_call.1} parent=1 // pred_check_branch
      %74 = sbr.rel (0) target = $region29
    $region28: #{tpu_custom_call.1} parent=1 // pred_region
      %76 = dma.done [#allocation7], 64
    $region29: #{tpu_custom_call.1} parent=1 // pred_fallthru
      _
    // Predicated region
    $region30: #{tpu_custom_call.1} parent=1 // pred_check
      _
    $region31: #{tpu_custom_call.1} parent=1 // pred_check_branch
      %78 = sbr.rel (0) target = $region33
    $region32: #{tpu_custom_call.1} parent=1 // pred_region
      %80 = dma.done [#allocation7], 64
    $region33: #{tpu_custom_call.1} parent=1 // pred_fallthru
      _
    // Predicated region
    $region34: #{tpu_custom_call.1} parent=1 // pred_check
      _
    $region35: #{tpu_custom_call.1} parent=1 // pred_check_branch
      %82 = sbr.rel (0) target = $region37
    $region36: #{tpu_custom_call.1} parent=1 // pred_region
      %84 = dma.done [#allocation10], 1024
    $region37: #{tpu_custom_call.1} parent=1 // pred_fallthru
      _
    %v86 = vld [vmem:[#allocation3] sm:$0x3]
    %vm87 = vcmask 254976
    %88 = vst.msk [vmem:[#allocation2] sm:$0x3] %vm87, %v86
    %v89 = vld [vmem:[#allocation6] sm:$0x3]
    %91 = vrot.lane.b32.xlu0 %v89, 32
    %v92 = vpop.permute.xlu0 %91
    %vm94 = vcmask 517376
    %95 = vst.msk [vmem:[#allocation2] sm:$0x3] %vm94, %v92
    %v96 = vld [vmem:[#allocation2] sm:$0x3]
    %v97 = vld [vmem:[#allocation8] sm:$0x3]
    %v98 = vld [vmem:[#allocation9] sm:$0xf]
    %v99 = vld [vmem:[#allocation9 + $0x4] sm:$0xf]
    %v100 = vld [vmem:[#allocation9 + $0x8] sm:$0xf]
    %v101 = vld [vmem:[#allocation9 + $0xc] sm:$0xf]
    %v102 = vld [vmem:[#allocation9 + $0x10] sm:$0xf]
    %v103 = vld [vmem:[#allocation9 + $0x14] sm:$0xf]
    %v104 = vld [vmem:[#allocation9 + $0x18] sm:$0xf]
    %v105 = vld [vmem:[#allocation9 + $0x1c] sm:$0xf]
    %v106 = vld [vmem:[%s4] sm:$0x1]
    %v107 = vpack.c.bf16 %v96, %v96
    %v109 = vperm.slane %v106, 0
    %v119 = vunpack.c.l.b16 %v98
    %v120 = vunpack.c.l.b16 %v99
    %v121 = vunpack.c.l.b16 %v100
    %v122 = vunpack.c.l.b16 %v101
    %v123 = vunpack.c.l.b16 %v102
    %v124 = vunpack.c.l.b16 %v103
    %v125 = vunpack.c.l.b16 %v104
    %v126 = vunpack.c.l.b16 %v105
    %v127 = vpack.c.b16 %v120, %v119
    %v128 = vpack.c.b16 %v122, %v121
    %v129 = vpack.c.b16 %v124, %v123
    %v130 = vpack.c.b16 %v126, %v125
    %vm135 = vcmask 523264
    %v137 = vsel %vm135, %v107, 0
    %139 = vmatpush.bf16.msra.mxu0 0
    %140 = vmatpush.bf16.msra.mxu0 0
    %141 = vmatpush.bf16.msra.mxu0 0
    %142 = vmatpush.bf16.msra.mxu0 0
    %143 = vmatpush.bf16.msra.mxu0 %v130
    %144 = vmatpush.bf16.msra.mxu0 %v129
    %145 = vmatpush.bf16.msra.mxu0 %v128
    %146 = vmatpush.bf16.msra.mxu0 %v127
    %147 = vmatmul.bf16.gmra.mxu0 %v137
    %v148 = vpop.f32.mrf.mxu0
    %v149 = vadd.f32 %v109, %v148
    %v150 = vpop.f32.mrf.mxu0
    %151 = vdwg.mxu0
    %v152 = vsub.f32 0.0, %v149
    %v153 = vmul.f32 %v152, 1.442695
    %v154 = vpow.pop %v153
    %v155 = vadd.f32 %v154, 1.0
    %v156 = vrcp.pop %v155
    %v157 = vtanh.pop %v149
    %159 = vrot.lane.b32.xlu0 %v97, 32
    %v160 = vpop.permute.xlu0 %159
    %v162 = vmul.f32 %v156, %v160
    %164 = vrot.lane.b32.xlu0 %v157, 64
    %v165 = vpop.permute.xlu0 %164
    %v167 = vmul.f32 %v156, %v165
    %169 = vrot.lane.b32.xlu0 %v167, 32
    %v170 = vpop.permute.xlu0 %169
    %v172 = vadd.f32 %v162, %v170
    %v173 = vtanh.pop %v172
    %175 = vrot.lane.b32.xlu0 %v173, 64
    %v176 = vpop.permute.xlu0 %175
    %v178 = vmul.f32 %v156, %v176
    %180 = vrot.lane.b32.xlu0 %v178, 32
    %v181 = vpop.permute.xlu0 %180
    %183 = vst.msk [vmem:[#allocation11] sm:$0x3] %vm87, %v181
    %185 = vrot.lane.b32.xlu0 %v172, 96
    %v186 = vpop.permute.xlu0 %185
    %188 = vst.msk [vmem:[#allocation12] sm:$0x3] %vm87, %v186
    %189 = vst.msk [vmem:[#allocation2] sm:$0x3] %vm87, %v181
    %s190 = scalar_lea.vmem [#allocation6], 2
    %v191 = vld [vmem:[%s190] sm:$0x3]
    %193 = vrot.lane.b32.xlu0 %v191, 32
    %v194 = vpop.permute.xlu0 %193
    %196 = vst.msk [vmem:[#allocation2] sm:$0x3] %vm94, %v194
    %v197 = vld [vmem:[#allocation2] sm:$0x3]
    %s198 = scalar_lea.vmem [#allocation8], 2
    %v199 = vld [vmem:[%s198] sm:$0x3]
    %s200 = scalar_lea.vmem [#allocation9], 32
    %v201 = vld [vmem:[%s200] sm:$0xf]
    %v202 = vld [vmem:[%s200 + $0x4] sm:$0xf]
    %v203 = vld [vmem:[%s200 + $0x8] sm:$0xf]
    %v204 = vld [vmem:[%s200 + $0xc] sm:$0xf]
    %v205 = vld [vmem:[%s200 + $0x10] sm:$0xf]
    %v206 = vld [vmem:[%s200 + $0x14] sm:$0xf]
    %v207 = vld [vmem:[%s200 + $0x18] sm:$0xf]
    %v208 = vld [vmem:[%s200 + $0x1c] sm:$0xf]
    %s209 = scalar_lea.vmem %s4, 1
    %v210 = vld [vmem:[%s209] sm:$0x1]
    %v211 = vpack.c.bf16 %v197, %v197
    %v213 = vperm.slane %v210, 0
    %v223 = vunpack.c.l.b16 %v201
    %v224 = vunpack.c.l.b16 %v202
    %v225 = vunpack.c.l.b16 %v203
    %v226 = vunpack.c.l.b16 %v204
    %v227 = vunpack.c.l.b16 %v205
    %v228 = vunpack.c.l.b16 %v206
    %v229 = vunpack.c.l.b16 %v207
    %v230 = vunpack.c.l.b16 %v208
    %v231 = vpack.c.b16 %v224, %v223
    %v232 = vpack.c.b16 %v226, %v225
    %v233 = vpack.c.b16 %v228, %v227
    %v234 = vpack.c.b16 %v230, %v229
    %v240 = vsel %vm135, %v211, 0
    %242 = vmatpush.bf16.msra.mxu0 0
    %243 = vmatpush.bf16.msra.mxu0 0
    %244 = vmatpush.bf16.msra.mxu0 0
    %245 = vmatpush.bf16.msra.mxu0 0
    %246 = vmatpush.bf16.msra.mxu0 %v234
    %247 = vmatpush.bf16.msra.mxu0 %v233
    %248 = vmatpush.bf16.msra.mxu0 %v232
    %249 = vmatpush.bf16.msra.mxu0 %v231
    %250 = vmatmul.bf16.gmra.mxu0 %v240
    %v251 = vpop.f32.mrf.mxu0
    %v252 = vadd.f32 %v213, %v251
    %v253 = vpop.f32.mrf.mxu0
    %254 = vdwg.mxu0
    %v255 = vsub.f32 0.0, %v252
    %v256 = vmul.f32 %v255, 1.442695
    %v257 = vpow.pop %v256
    %v258 = vadd.f32 %v257, 1.0
    %v259 = vrcp.pop %v258
    %v260 = vtanh.pop %v252
    %262 = vrot.lane.b32.xlu0 %v199, 32
    %v263 = vpop.permute.xlu0 %262
    %v265 = vmul.f32 %v259, %v263
    %267 = vrot.lane.b32.xlu0 %v260, 64
    %v268 = vpop.permute.xlu0 %267
    %v270 = vmul.f32 %v259, %v268
    %272 = vrot.lane.b32.xlu0 %v270, 32
    %v273 = vpop.permute.xlu0 %272
    %v275 = vadd.f32 %v265, %v273
    %v276 = vtanh.pop %v275
    %278 = vrot.lane.b32.xlu0 %v276, 64
    %v279 = vpop.permute.xlu0 %278
    %v281 = vmul.f32 %v259, %v279
    %283 = vrot.lane.b32.xlu0 %v281, 32
    %v284 = vpop.permute.xlu0 %283
    %s286 = scalar_lea.vmem [#allocation11], 2
    %287 = vst.msk [vmem:[%s286] sm:$0x3] %vm87, %v284
    %289 = vrot.lane.b32.xlu0 %v275, 96
    %v290 = vpop.permute.xlu0 %289
    %s292 = scalar_lea.vmem [#allocation12], 2
    %293 = vst.msk [vmem:[%s292] sm:$0x3] %vm87, %v290
    %294 = vst.msk [vmem:[#allocation2] sm:$0x3] %vm87, %v284
    // Predicated region
    $region38: #{tpu_custom_call.1} parent=1 // pred_check
      _
    $region39: #{tpu_custom_call.1} parent=1 // pred_check_branch
      %296 = sbr.rel (0) target = $region41
    $region40: #{tpu_custom_call.1} parent=1 // pred_region
      %298 = vsyncadd [#allocation5], 0
      %s299 = sshll.u32 [#allocation11], 4
      %s300 = int_to_ptr.vmem [resolvable:$true] %s299
      %s301 = sshll.u32 %s5, 4
      %s302 = int_to_ptr.hbm [resolvable:$true] %s301
      %307 = dma.vmem_to_hbm [thread:$0]  %s300, 64, %s302, [#allocation5], 32, 32, 2
    $region41: #{tpu_custom_call.1} parent=1 // pred_fallthru
      _
    // Predicated region
    $region42: #{tpu_custom_call.1} parent=1 // pred_check
      _
    $region43: #{tpu_custom_call.1} parent=1 // pred_check_branch
      %309 = sbr.rel (0) target = $region45
    $region44: #{tpu_custom_call.1} parent=1 // pred_region
      %311 = vsyncadd [#allocation13], 0
      %s312 = sshll.u32 [#allocation12], 4
      %s313 = int_to_ptr.vmem [resolvable:$true] %s312
      %s314 = sshll.u32 %s6, 4
      %s315 = int_to_ptr.hbm [resolvable:$true] %s314
      %320 = dma.vmem_to_hbm [thread:$0]  %s313, 64, %s315, [#allocation13], 32, 32, 2
    $region45: #{tpu_custom_call.1} parent=1 // pred_fallthru
      _
    // Predicated region
    $region46: #{tpu_custom_call.1} parent=1 // pred_check
      _
    $region47: #{tpu_custom_call.1} parent=1 // pred_check_branch
      %322 = sbr.rel (0) target = $region49
    $region48: #{tpu_custom_call.1} parent=1 // pred_region
      %324 = dma.done [#allocation5], 64
    $region49: #{tpu_custom_call.1} parent=1 // pred_fallthru
      _
    // Predicated region
    $region50: #{tpu_custom_call.1} parent=1 // pred_check
      _
    $region51: #{tpu_custom_call.1} parent=1 // pred_check_branch
      %326 = sbr.rel (0) target = $region53
    $region52: #{tpu_custom_call.1} parent=1 // pred_region
      %328 = dma.done [#allocation13], 64
    $region53: #{tpu_custom_call.1} parent=1 // pred_fallthru
      _
    %329 = vsyncpa [#allocation4], 1
    %330 = vsyncpa [#allocation7], 1
    %331 = vsyncpa [#allocation10], 1
    %332 = vsyncpa [#allocation5], 1
    %333 = vsyncpa [#allocation13], 1

</llo_original>
